<compile_context>
chip_gen: v7x
topology: tpu7x:2x2x1
jax: 0.10.0
libtpu: 0.0.40
codegen_flags: <defaults>
</compile_context>

<pallas_src>
import jax
import jax.numpy as jnp
from jax.experimental import pallas as pl
from jax.experimental.pallas import tpu as pltpu


def _round_up(n, m):
    return -(-n // m) * m


def regressor_kernel(xt_ref, w1_ref, b1_ref, w2_ref, b2_ref, o_ref):
    # xt: (D, TB)  input molvecs, batch on the 128-lane axis
    # w1: (H, D)   reg_fc1.weight (PyTorch [out, in] layout)
    # b1: (H, 1)   reg_fc1.bias
    # w2: (H, 1)   reg_fc2.weight, transposed to a column
    # b2: (1, 1)   reg_fc2.bias (SMEM scalar)
    # o:  (1, TB)  lane-dense output tile

    # reg_fc1: MXU matmul (M=H, K=D, N=TB) + bias/ReLU on the VPU in f32.
    # (For very large, MXU-bound batches on v6e/v7x the dot operands could be
    #  cast to bf16; kept f32 here to match the f32 reference exactly.)
    h = jnp.dot(w1_ref[...], xt_ref[...], preferred_element_type=jnp.float32)
    h = jnp.maximum(h + b1_ref[...], 0.0)

    # TODO(synk): nn.Dropout(p=0.1) is identity in eval/inference mode; training-mode
    # stochastic masking (pltpu.prng_*) is intentionally not applied here.

    # reg_fc2 (out_features == 1): VPU multiply + sublane reduction instead of a
    # wasteful (H x 1)-RHS MXU push. Result stays lane-dense over the batch.
    y = jnp.sum(h * w2_ref[...], axis=0, keepdims=True) + b2_ref[0, 0]
    o_ref[...] = y.astype(o_ref.dtype)


def regressor_forward(x, w1, b1, w2, b2, *, block_b=512):
    """Fused Regressor forward.

    x : (B, D) float32 molecule vectors.
    w1: (D//2, D)  reg_fc1.weight (PyTorch [out, in] layout)
    b1: (D//2,)    reg_fc1.bias
    w2: (1, D//2)  reg_fc2.weight
    b2: (1,)       reg_fc2.bias
    Returns (B,) — torch.squeeze of the (B, 1) linear output.
    """
    B, D = x.shape
    H = D // 2
    assert w1.shape == (H, D) and b1.shape == (H,)
    assert w2.shape == (1, H) and b2.shape == (1,)
    assert block_b % 128 == 0

    # Layout plumbing: feature-major so the batch sits on the 128-lane axis.
    xt = x.T                                        # (D, B)
    tb = min(block_b, _round_up(B, 128))            # lane-dense batch tile (>= 128)
    bp = _round_up(B, tb)                           # padded batch
    if bp != B:
        xt = jnp.pad(xt, ((0, 0), (0, bp - B)))     # padded columns sliced off below

    out = pl.pallas_call(
        regressor_kernel,
        out_shape=jax.ShapeDtypeStruct((1, bp), x.dtype),
        grid=(bp // tb,),
        in_specs=[
            # x tile marches along the batch (lane) axis; double-buffered DMA.
            pl.BlockSpec((D, tb), lambda i: (0, i)),
            # Weights / biases: constant block index -> loaded once, stay resident.
            pl.BlockSpec((H, D), lambda i: (0, 0)),
            pl.BlockSpec((H, 1), lambda i: (0, 0)),
            pl.BlockSpec((H, 1), lambda i: (0, 0)),
            # Scalar fc2 bias in SMEM.
            pl.BlockSpec(memory_space=pltpu.SMEM),
        ],
        out_specs=pl.BlockSpec((1, tb), lambda i: (0, i)),
        compiler_params=pltpu.CompilerParams(
            # Independent batch tiles -> shard across v7x's 2 TensorCores.
            dimension_semantics=("parallel",),
        ),
    )(xt, w1, b1.reshape(H, 1), w2.reshape(H, 1), b2.reshape(1, 1))

    # Drop batch padding; torch.squeeze of the (B, 1) output -> (B,).
    return out[0, :B]


if __name__ == "__main__":
    key = jax.random.PRNGKey(0)
    k_x, k_w1, k_b1, k_w2, k_b2, k_x2 = jax.random.split(key, 6)

    molvec_dim = 32
    H = molvec_dim // 2

    # Deterministic synthetic parameters in PyTorch nn.Linear layout ([out, in]).
    bound1 = 1.0 / (molvec_dim ** 0.5)
    w1 = jax.random.uniform(k_w1, (H, molvec_dim), jnp.float32, -bound1, bound1)
    b1 = jax.random.uniform(k_b1, (H,), jnp.float32, -bound1, bound1)
    bound2 = 1.0 / (H ** 0.5)
    w2 = jax.random.uniform(k_w2, (1, H), jnp.float32, -bound2, bound2)
    b2 = jax.random.uniform(k_b2, (1,), jnp.float32, -bound2, bound2)

    def ref_fn(x):
        # Eval-mode dropout == identity.
        return jnp.squeeze(jnp.maximum(x @ w1.T + b1, 0.0) @ w2.T + b2, axis=-1)

    # Small batch (pads up to a single 128-wide lane tile, grid = 1).
    x_small = jax.random.normal(k_x, (8, molvec_dim), dtype=jnp.float32)
    out_small = regressor_forward(x_small, w1, b1, w2, b2)
    jax.block_until_ready(out_small)
    assert out_small.shape == (8,)
    assert jnp.allclose(out_small, ref_fn(x_small), atol=2e-5), "mismatch (small batch)"

    # Non-multiple batch exercising a multi-step grid (block_b=128 -> 2 steps + padding).
    x_big = jax.random.normal(k_x2, (200, molvec_dim), dtype=jnp.float32)
    out_big = regressor_forward(x_big, w1, b1, w2, b2, block_b=128)
    jax.block_until_ready(out_big)
    assert out_big.shape == (200,)
    assert jnp.allclose(out_big, ref_fn(x_big), atol=2e-5), "mismatch (multi-tile batch)"

    print("KERNEL_OK")
</pallas_src>

<mosaic_0001>
module attributes {stable_mosaic.version = 11 : i64} {
  func.func @regressor_kernel(%arg0: i32, %arg1: memref<32x128xf32, #tpu.memory_space<vmem>>, %arg2: memref<16x32xf32, #tpu.memory_space<vmem>>, %arg3: memref<16x1xf32, #tpu.memory_space<vmem>>, %arg4: memref<16x1xf32, #tpu.memory_space<vmem>>, %arg5: memref<1x1xf32, #tpu.memory_space<smem>>, %arg6: memref<1x128xf32, #tpu.memory_space<vmem>>) attributes {dimension_semantics = [#tpu.dimension_semantics<parallel>], iteration_bounds = array<i64: 1>, scalar_prefetch = 0 : i64, scratch_operands = 0 : i64, tpu.core_type = #tpu.core_type<tc>, window_params = [{transform_indices = @transform_0, window_bounds = array<i64: 32, 128>}, {pipeline_mode = #tpu.pipeline_mode<synchronous>, transform_indices = @transform_1, window_bounds = array<i64: 16, 32>}, {pipeline_mode = #tpu.pipeline_mode<synchronous>, transform_indices = @transform_2, window_bounds = array<i64: 16, 1>}, {pipeline_mode = #tpu.pipeline_mode<synchronous>, transform_indices = @transform_3, window_bounds = array<i64: 16, 1>}, {transform_indices = @transform_4, window_bounds = array<i64: 1, 1>}, {transform_indices = @transform_5, window_bounds = array<i64: 1, 128>}]} {
    %c0 = arith.constant 0 : index
    %c0_0 = arith.constant 0 : index
    %0 = vector.load %arg2[%c0, %c0_0] : memref<16x32xf32, #tpu.memory_space<vmem>>, vector<16x32xf32>
    %c0_1 = arith.constant 0 : index
    %c0_2 = arith.constant 0 : index
    %1 = vector.load %arg1[%c0_1, %c0_2] : memref<32x128xf32, #tpu.memory_space<vmem>>, vector<32x128xf32>
    %cst = arith.constant dense<0.000000e+00> : vector<16x128xf32>
    %2 = tpu.matmul %0, %1, %cst {dimension_numbers = #tpu.dot_dimension_numbers<[1], [0], [0], [1], [0, 0, 1, 1], [], []>} : vector<16x32xf32>, vector<32x128xf32>, vector<16x128xf32> -> vector<16x128xf32>
    %c0_3 = arith.constant 0 : index
    %c0_4 = arith.constant 0 : index
    %3 = vector.load %arg3[%c0_3, %c0_4] : memref<16x1xf32, #tpu.memory_space<vmem>>, vector<16x1xf32>
    %4 = vector.broadcast %3 : vector<16x1xf32> to vector<16x128xf32>
    %5 = arith.addf %2, %4 : vector<16x128xf32>
    %cst_5 = arith.constant 0.000000e+00 : f32
    %6 = vector.broadcast %cst_5 : f32 to vector<16x128xf32>
    %7 = arith.maximumf %5, %6 : vector<16x128xf32>
    %c0_6 = arith.constant 0 : index
    %c0_7 = arith.constant 0 : index
    %8 = vector.load %arg4[%c0_6, %c0_7] : memref<16x1xf32, #tpu.memory_space<vmem>>, vector<16x1xf32>
    %9 = vector.broadcast %8 : vector<16x1xf32> to vector<16x128xf32>
    %10 = arith.mulf %7, %9 : vector<16x128xf32>
    %cst_8 = arith.constant dense<0.000000e+00> : vector<128xf32>
    %11 = vector.multi_reduction <add>, %10, %cst_8 [0] : vector<16x128xf32> to vector<128xf32>
    %12 = vector.shape_cast %11 : vector<128xf32> to vector<1x128xf32>
    %c0_9 = arith.constant 0 : index
    %c0_10 = arith.constant 0 : index
    %13 = memref.load %arg5[%c0_9, %c0_10] : memref<1x1xf32, #tpu.memory_space<smem>>
    %14 = vector.broadcast %13 : f32 to vector<1x128xf32>
    %15 = arith.addf %12, %14 : vector<1x128xf32>
    %c0_11 = arith.constant 0 : index
    %c0_12 = arith.constant 0 : index
    %16 = vector.load %arg6[%c0_11, %c0_12] : memref<1x128xf32, #tpu.memory_space<vmem>>, vector<1x128xf32>
    tpu.vector_store %arg6[%c0_11, %c0_12], %15 {strides = array<i32>} : memref<1x128xf32, #tpu.memory_space<vmem>>, vector<1x128xf32>,
    return
  }
  func.func @transform_0(%arg0: i32) -> (i32, i32) {
    %c0_i32 = arith.constant 0 : i32
    %c0_i32_0 = arith.constant 0 : i32
    return %c0_i32, %arg0 : i32, i32
  }
  func.func @transform_1(%arg0: i32) -> (i32, i32) {
    %c0_i32 = arith.constant 0 : i32
    %c0_i32_0 = arith.constant 0 : i32
    %c0_i32_1 = arith.constant 0 : i32
    return %c0_i32, %c0_i32_0 : i32, i32
  }
  func.func @transform_2(%arg0: i32) -> (i32, i32) {
    %c0_i32 = arith.constant 0 : i32
    %c0_i32_0 = arith.constant 0 : i32
    %c0_i32_1 = arith.constant 0 : i32
    return %c0_i32, %c0_i32_0 : i32, i32
  }
  func.func @transform_3(%arg0: i32) -> (i32, i32) {
    %c0_i32 = arith.constant 0 : i32
    %c0_i32_0 = arith.constant 0 : i32
    %c0_i32_1 = arith.constant 0 : i32
    return %c0_i32, %c0_i32_0 : i32, i32
  }
  func.func @transform_4(%arg0: i32) -> (i32, i32) {
    %c0_i32 = arith.constant 0 : i32
    %c0_i32_0 = arith.constant 0 : i32
    %c0_i32_1 = arith.constant 0 : i32
    return %c0_i32, %c0_i32_0 : i32, i32
  }
  func.func @transform_5(%arg0: i32) -> (i32, i32) {
    %c0_i32 = arith.constant 0 : i32
    %c0_i32_0 = arith.constant 0 : i32
    return %c0_i32, %arg0 : i32, i32
  }
}

</mosaic_0001>

<llo_original>
// kernel: tpu_custom_call.1
$region0: #{tpu_custom_call.1}
  #allocation0 [shape = 'u32[]', space=smem, size = 0x4, offset = 0x4, fixed_abs, tag = 'smem constant byte address 0x4 - core index']
  #allocation1 [shape = 'u32[144,128]{1,0:T(1,128)}', space=vmem, size = 0x12000, scoped, tag = 'internal scratch']
  #allocation2 [shape = 'f32[1,1]{1,0:T(1,128)S(6)}', space=smem, size = 0x200, scoped, tag = 'scoped memory for tpu_custom_call.1']
  %s0 = inlined_call_operand.vmem [shape: f32[32,128], index: 0, kind: input, shape index: {}]
  %s1 = inlined_call_operand.hbm [shape: f32[16,32], index: 1, kind: input, shape index: {}]
  %s2 = inlined_call_operand.vmem [shape: f32[16,1], index: 2, kind: input, shape index: {}]
  %s3 = inlined_call_operand.vmem [shape: f32[16,1], index: 3, kind: input, shape index: {}]
  %s4 = inlined_call_operand.<no memory space> [shape: f32[1,1], index: 4, kind: input, shape index: {}]
  %s5 = inlined_call_operand.hbm [shape: f32[1,128], index: 5, kind: output, shape index: {}]
  %s6 = sld [smem:[#allocation0]]
  $region34: #{tpu_custom_call.1} parent=0
    _
  %s8 = ssub.s32 1, %s6
  %s9 = scalar_select 0, %s8, %s6
  %10 = sst [smem:[#allocation2]] %s4
  $region1: #{tpu_custom_call.1} parent=0
    #allocation3 [shape = 'u8[8192]{0}', space=vmem, size = 0x2000, scoped, tag = 'input window, operand 1, single buffered']
    #allocation4 [shape = 's32[1]{0}', space=sflag, size = 0x4, scoped, tag = 'scoped memory for tpu_custom_call.1']
    #allocation5 [shape = 's32[1]{0}', space=sflag, size = 0x4, scoped, tag = 'scoped memory for tpu_custom_call.1']
    #allocation6 [shape = 'u8[512]{0}', space=vmem, size = 0x400, scoped, tag = 'output window, operand 0, single buffered']
    %11 = vsyncpa [#allocation4], 0
    %12 = vsyncpa [#allocation5], 0
    // Predicated region
    $region2: #{tpu_custom_call.1} parent=1 // pred_check
      _
    $region3: #{tpu_custom_call.1} parent=1 // pred_check_branch
      %14 = sbr.rel (0) target = $region5
    $region4: #{tpu_custom_call.1} parent=1 // pred_region
      _
    $region5: #{tpu_custom_call.1} parent=1 // pred_fallthru
      _
    // Predicated region
    $region6: #{tpu_custom_call.1} parent=1 // pred_check
      _
    $region7: #{tpu_custom_call.1} parent=1 // pred_check_branch
      %16 = sbr.rel (0) target = $region9
    $region8: #{tpu_custom_call.1} parent=1 // pred_region
      %s18 = ssub.s32 256, 256
      %19 = vsyncadd [#allocation4], %s18
      %s20 = sshll.u32 [#allocation3], 4
      %s21 = int_to_ptr.vmem [resolvable:$true] %s20
      %26 = dma.hbm_to_vmem [thread:$0]  %s1, 256, %s21, [#allocation4], 128, 128, 8
    $region9: #{tpu_custom_call.1} parent=1 // pred_fallthru
      _
    // Predicated region
    $region10: #{tpu_custom_call.1} parent=1 // pred_check
      _
    $region11: #{tpu_custom_call.1} parent=1 // pred_check_branch
      %28 = sbr.rel (0) target = $region13
    $region12: #{tpu_custom_call.1} parent=1 // pred_region
      _
    $region13: #{tpu_custom_call.1} parent=1 // pred_fallthru
      _
    // Predicated region
    $region14: #{tpu_custom_call.1} parent=1 // pred_check
      _
    $region15: #{tpu_custom_call.1} parent=1 // pred_check_branch
      %30 = sbr.rel (0) target = $region17
    $region16: #{tpu_custom_call.1} parent=1 // pred_region
      _
    $region17: #{tpu_custom_call.1} parent=1 // pred_fallthru
      _
    // Predicated region
    $region18: #{tpu_custom_call.1} parent=1 // pred_check
      _
    $region19: #{tpu_custom_call.1} parent=1 // pred_check_branch
      %32 = sbr.rel (0) target = $region21
    $region20: #{tpu_custom_call.1} parent=1 // pred_region
      _
    $region21: #{tpu_custom_call.1} parent=1 // pred_fallthru
      _
    // Predicated region
    $region22: #{tpu_custom_call.1} parent=1 // pred_check
      _
    $region23: #{tpu_custom_call.1} parent=1 // pred_check_branch
      %34 = sbr.rel (0) target = $region25
    $region24: #{tpu_custom_call.1} parent=1 // pred_region
      %35 = dma.done [#allocation4], 256
    $region25: #{tpu_custom_call.1} parent=1 // pred_fallthru
      _
    %v36 = vld [vmem:[#allocation3] sm:$0xff]
    %v37 = vld [vmem:[#allocation3 + $0x8] sm:$0xff]
    %v38 = vld [vmem:[%s0] sm:$0xff]
    %v39 = vld [vmem:[%s0 + $0x8] sm:$0xff]
    %v40 = vld [vmem:[%s0 + $0x10] sm:$0xff]
    %v41 = vld [vmem:[%s0 + $0x18] sm:$0xff]
    %v42 = vld [vmem:[%s2] sm:$0xff]
    %v43 = vld [vmem:[%s2 + $0x8] sm:$0xff]
    %45 = vset.pattern.permute.xlu0 0
    %46 = vperm.xlu0 %45, %v42
    %v47 = vpop.permute.xlu0 %46
    %50 = vset.pattern.permute.xlu0 0
    %51 = vperm.xlu0 %50, %v43
    %v52 = vpop.permute.xlu0 %51
    %vm54 = vcmask 261120
    %v56 = vsel %vm54, %v36, 0
    %v59 = vsel %vm54, %v37, 0
    %61 = vmatprep.subr.mxu0 0.0
    %62 = vmatpush1.msra.mxu0 %v38
    %63 = vmatprep.subr.mxu0 0.0
    %64 = vmatpush1.msra.mxu0 %v39
    %65 = vmatprep.subr.mxu0 0.0
    %66 = vmatpush1.msra.mxu0 %v40
    %67 = vmatprep.subr.mxu0 0.0
    %68 = vmatpush1.msra.mxu0 %v41
    %69 = vmatprep.subr.mxu0 0.0
    %70 = vmatpush1.msra.mxu0 0.0
    %71 = vmatprep.subr.mxu0 0.0
    %72 = vmatpush1.msra.mxu0 0.0
    %73 = vmatprep.subr.mxu0 0.0
    %74 = vmatpush1.msra.mxu0 0.0
    %75 = vmatprep.subr.mxu0 0.0
    %76 = vmatpush1.msra.mxu0 0.0
    %77 = vmatprep.subr.mxu0 0.0
    %78 = vmatpush1.msra.mxu0 0.0
    %79 = vmatprep.subr.mxu0 0.0
    %80 = vmatpush1.msra.mxu0 0.0
    %81 = vmatprep.subr.mxu0 0.0
    %82 = vmatpush1.msra.mxu0 0.0
    %83 = vmatprep.subr.mxu0 0.0
    %84 = vmatpush1.msra.mxu0 0.0
    %85 = vmatprep.subr.mxu0 0.0
    %86 = vmatpush1.msra.mxu0 0.0
    %87 = vmatprep.subr.mxu0 0.0
    %88 = vmatpush1.msra.mxu0 0.0
    %89 = vmatprep.subr.mxu0 0.0
    %90 = vmatpush1.msra.mxu0 0.0
    %91 = vmatprep.subr.mxu0 0.0
    %92 = vmatpush1.msra.mxu0 0.0
    %93 = vmatprep.subr.mxu0 0.0
    %94 = vmatpush1.msra.mxu0 0.0
    %95 = vmatprep.subr.mxu0 0.0
    %96 = vmatpush1.msra.mxu0 0.0
    %97 = vmatprep.subr.mxu0 0.0
    %98 = vmatpush1.msra.mxu0 0.0
    %99 = vmatprep.subr.mxu0 0.0
    %100 = vmatpush1.msra.mxu0 0.0
    %101 = vmatprep.subr.mxu0 0.0
    %102 = vmatpush1.msra.mxu0 0.0
    %103 = vmatprep.subr.mxu0 0.0
    %104 = vmatpush1.msra.mxu0 0.0
    %105 = vmatprep.subr.mxu0 0.0
    %106 = vmatpush1.msra.mxu0 0.0
    %107 = vmatprep.subr.mxu0 0.0
    %108 = vmatpush1.msra.mxu0 0.0
    %109 = vmatprep.subr.mxu0 0.0
    %110 = vmatpush1.msra.mxu0 0.0
    %111 = vmatprep.subr.mxu0 0.0
    %112 = vmatpush1.msra.mxu0 0.0
    %113 = vmatprep.subr.mxu0 0.0
    %114 = vmatpush1.msra.mxu0 0.0
    %115 = vmatprep.subr.mxu0 0.0
    %116 = vmatpush1.msra.mxu0 0.0
    %117 = vmatprep.subr.mxu0 0.0
    %118 = vmatpush1.msra.mxu0 0.0
    %119 = vmatprep.subr.mxu0 0.0
    %120 = vmatpush1.msra.mxu0 0.0
    %121 = vmatprep.subr.mxu0 0.0
    %122 = vmatpush1.msra.mxu0 0.0
    %123 = vmatprep.subr.mxu0 0.0
    %124 = vmatpush1.msra.mxu0 0.0
    %125 = vmatprep.mubr.f32.mxu0 0.0
    %126 = vmatmul.mubr.f32.gmra.mrb[0].mxu0 %v56
    %v127 = vpop.f32.mrb[0].mxu0
    %v128 = vadd.f32 %v47, %v127
    %v129 = vpop.f32.mrb[0].mxu0
    %130 = vmatprep.mubr.f32.mxu0 0.0
    %131 = vmatmul.mubr.f32.gmra.mrb[0].mxu0 %v59
    %v132 = vpop.f32.mrb[0].mxu0
    %v133 = vadd.f32 %v52, %v132
    %v134 = vpop.f32.mrb[0].mxu0
    %135 = vdwg.mxu0
    %v136 = vmax.f32 %v128, 0.0
    %v137 = vmax.f32 %v133, 0.0
    %v138 = vld [vmem:[%s3] sm:$0xff]
    %v139 = vld [vmem:[%s3 + $0x8] sm:$0xff]
    %141 = vset.pattern.permute.xlu0 0
    %142 = vperm.xlu0 %141, %v138
    %v143 = vpop.permute.xlu0 %142
    %146 = vset.pattern.permute.xlu0 0
    %147 = vperm.xlu0 %146, %v139
    %v148 = vpop.permute.xlu0 %147
    %v150 = vmul.f32 %v136, %v143
    %v151 = vmul.f32 %v137, %v148
    %v152 = vadd.f32 %v150, %v151
    %v153 = vrot.slane %v152, 4
    %v154 = vadd.f32 %v152, %v153
    %v155 = vrot.slane %v154, 2
    %v156 = vadd.f32 %v154, %v155
    %v157 = vrot.slane %v156, 1
    %v158 = vadd.f32 %v156, %v157
    %s159 = sld [smem:[#allocation2]]
    %v160 = vstv %s159
    %v161 = vadd.f32 %v158, %v160
    %162 = vst [vmem:[#allocation6] sm:$0x1] %v161
    // Predicated region
    $region26: #{tpu_custom_call.1} parent=1 // pred_check
      _
    $region27: #{tpu_custom_call.1} parent=1 // pred_check_branch
      %164 = sbr.rel (0) target = $region29
    $region28: #{tpu_custom_call.1} parent=1 // pred_region
      %s166 = ssub.s32 16, 16
      %167 = vsyncadd [#allocation5], %s166
      %s169 = sshll.u32 [#allocation6], 4
      %s170 = int_to_ptr.vmem [resolvable:$true] %s169
      %172 = dma.vmem_to_hbm [thread:$0]  %s170, 16, %s5, [#allocation5]
    $region29: #{tpu_custom_call.1} parent=1 // pred_fallthru
      _
    // Predicated region
    $region30: #{tpu_custom_call.1} parent=1 // pred_check
      _
    $region31: #{tpu_custom_call.1} parent=1 // pred_check_branch
      %174 = sbr.rel (0) target = $region33
    $region32: #{tpu_custom_call.1} parent=1 // pred_region
      %175 = dma.done [#allocation5], 16
    $region33: #{tpu_custom_call.1} parent=1 // pred_fallthru
      _
    %176 = vsyncpa [#allocation4], 1
    %177 = vsyncpa [#allocation5], 1

</llo_original>
